<compile_context>
chip_gen: v7x
topology: tpu7x:2x2x1
jax: 0.10.0
libtpu: 0.0.40
codegen_flags: <defaults>
</compile_context>

<pallas_src>
import functools

import jax
import jax.numpy as jnp
from jax import lax
from jax.experimental import pallas as pl
from jax.experimental.pallas import tpu as pltpu


def rnn_kernel(x_ref, wih_ref, whh_ref, b_ref, wfc_ref, bfc_ref,
               out_ref, h_ref, hs_ref, *, time_chunk, bb):
    """One grid step = one batch block x one chunk of `time_chunk` timesteps.

    x_ref   : (time_chunk * bb, D)   time-major rows within the block: row = t*bb + j
    wih_ref : (D, H)   = W_ih^T                       (f32)
    whh_ref : (H, H)   = W_hh^T                       (bf16, serial-path matmul)
    b_ref   : (1, H)   = b_ih + b_hh
    wfc_ref : (H, O)   = W_fc^T
    bfc_ref : (1, O)
    out_ref : (time_chunk * bb, O)
    h_ref   : (bb, H)  bf16          recurrent hidden state (carried across chunks)
    hs_ref  : (time_chunk * bb, H)   xW buffer, overwritten in place with h_t (f32)
    """
    # zero-init hidden state at the first time chunk of each batch block
    @pl.when(pl.program_id(1) == 0)
    def _():
        h_ref[...] = jnp.zeros_like(h_ref)

    # (1) non-recurrent input projection for the whole chunk: one big MXU matmul
    hs_ref[...] = (jnp.dot(x_ref[...], wih_ref[...],
                           preferred_element_type=jnp.float32)
                   + b_ref[...])

    whh = whh_ref[...]  # bf16, hoisted out of the loop

    # (2) serial recurrence: only the (bb,H)@(H,H) bf16 matmul + tanh per step.
    #     Always unrolled so adjacent-step hs loads/stores are hoisted off the
    #     matmul->tanh chain.
    def body(t, h_prev):
        r0 = pl.multiple_of(t * bb, 8)
        pre = hs_ref[pl.ds(r0, bb), :] + jnp.dot(
            h_prev, whh, preferred_element_type=jnp.float32)
        h_new = jnp.tanh(pre)
        hs_ref[pl.ds(r0, bb), :] = h_new
        return h_new.astype(jnp.bfloat16)

    h_last = lax.fori_loop(0, time_chunk, body, h_ref[...],
                           unroll=min(8, time_chunk))
    h_ref[...] = h_last  # carry into the next chunk

    # (3) batched FC head for the whole chunk: one matmul, one dense store
    out_ref[...] = (jnp.dot(hs_ref[...], wfc_ref[...],
                            preferred_element_type=jnp.float32)
                    + bfc_ref[...]).astype(out_ref.dtype)


def _pick_time_chunk(T, bb, D, H, O, *, vmem_budget_bytes=32 << 20, cap=256):
    """Largest chunk whose per-generation VMEM footprint fits the budget.

    Per-timestep cost: double-buffered x block + double-buffered out block
    (both f32) plus the f32 hs scratch.  Budget of 32 MiB leaves headroom on
    v7x (64 MiB physical / TC) and is far below v5e/v6e physical VMEM.
    """
    per_step = bb * 4 * (2 * D + 2 * O + H)
    return int(max(1, min(T, cap, vmem_budget_bytes // per_step)))


def rnn_forward(x, w_ih, w_hh, b_ih, b_hh, w_fc, b_fc, *,
                time_chunk=None, num_batch_blocks=1):
    """x: (B, T, D) float32, batch_first like the PyTorch module.

    w_ih: (H, D), w_hh: (H, H), b_ih/b_hh: (H,), w_fc: (O, H), b_fc: (O,)
    num_batch_blocks: set to 2 on v7x to split the batch across both TensorCores
                      (the batch axis of the grid is marked "parallel").
    Returns (B, T, O) float32.
    """
    B, T, D = x.shape
    H = w_ih.shape[0]
    O = w_fc.shape[0]

    # batch blocking: bb rows per block, padded to a multiple of 8 sublanes
    n_bb = max(1, int(num_batch_blocks))
    bb = max(8, ((-(-B // n_bb)) + 7) // 8 * 8)
    B_p = bb * n_bb

    # VMEM-aware time chunk; pad T up to a multiple of it (no divisor hunting,
    # so prime/awkward T never degrades to chunk=1).
    if time_chunk is None:
        time_chunk = _pick_time_chunk(T, bb, D, H, O)
    time_chunk = int(max(1, min(time_chunk, T)))
    T_pad = -(-T // time_chunk) * time_chunk
    n_chunks = T_pad // time_chunk
    rows = time_chunk * bb

    # Rearrange x so each (batch block, time chunk) is a contiguous, time-major
    # 2D slab of rows: row = (i_bb*T_pad + t)*bb + j.
    x_p = jnp.pad(x, ((0, B_p - B), (0, T_pad - T), (0, 0)))          # (B_p, T_pad, D)
    x2 = (x_p.reshape(n_bb, bb, T_pad, D)
              .transpose(0, 2, 1, 3)
              .reshape(n_bb * T_pad * bb, D))

    # pre-transpose weights so the kernel does plain (M,K)@(K,N) matmuls; fold biases.
    wih_t = w_ih.T.astype(jnp.float32)              # (D, H)
    whh_bf16 = w_hh.T.astype(jnp.bfloat16)          # (H, H)  serial-path matmul in bf16
    wfc_t = w_fc.T.astype(jnp.float32)              # (H, O)
    b2 = (b_ih + b_hh).reshape(1, H).astype(jnp.float32)
    bfc2 = b_fc.reshape(1, O).astype(jnp.float32)

    # explicit VMEM limit computed from the actual footprint (lifts the v5e 16 MiB
    # scoped default; stays well under v7x's 64 MiB because of the 32 MiB chunk budget).
    weight_bytes = 4 * (D * H + H * O + H + O) + 2 * (H * H)
    vmem_bytes = (2 * rows * D * 4          # x block, double-buffered
                  + 2 * rows * O * 4        # out block, double-buffered
                  + rows * H * 4            # hs scratch
                  + bb * H * 2              # h scratch (bf16)
                  + 2 * weight_bytes        # weights/biases, double-buffered
                  + (4 << 20))              # compiler headroom
    vmem_limit = int(min(max(vmem_bytes, 16 << 20), 64 << 20))

    kernel = functools.partial(rnn_kernel, time_chunk=time_chunk, bb=bb)

    out2 = pl.pallas_call(
        kernel,
        out_shape=jax.ShapeDtypeStruct((n_bb * T_pad * bb, O), jnp.float32),
        grid_spec=pltpu.PrefetchScalarGridSpec(
            num_scalar_prefetch=0,
            grid=(n_bb, n_chunks),
            in_specs=[
                pl.BlockSpec((rows, D), lambda i, c: (i * n_chunks + c, 0)),  # x rows
                pl.BlockSpec((D, H), lambda i, c: (0, 0)),                    # W_ih^T
                pl.BlockSpec((H, H), lambda i, c: (0, 0)),                    # W_hh^T (bf16)
                pl.BlockSpec((1, H), lambda i, c: (0, 0)),                    # b_ih + b_hh
                pl.BlockSpec((H, O), lambda i, c: (0, 0)),                    # W_fc^T
                pl.BlockSpec((1, O), lambda i, c: (0, 0)),                    # b_fc
            ],
            out_specs=pl.BlockSpec((rows, O), lambda i, c: (i * n_chunks + c, 0)),
            scratch_shapes=[
                pltpu.VMEM((bb, H), jnp.bfloat16),   # recurrent hidden state (carried)
                pltpu.VMEM((rows, H), jnp.float32),  # xW / h_t buffer for the chunk
            ],
        ),
        compiler_params=pltpu.CompilerParams(
            # batch blocks are independent (megacore on v7x); chunks carry h -> sequential
            dimension_semantics=("parallel", "arbitrary"),
            vmem_limit_bytes=vmem_limit,
        ),
    )(x2, wih_t, whh_bf16, b2, wfc_t, bfc2)

    out = (out2.reshape(n_bb, T_pad, bb, O)
               .transpose(0, 2, 1, 3)
               .reshape(B_p, T_pad, O)[:B, :T, :])
    return out


def rnn_reference(x, w_ih, w_hh, b_ih, b_hh, w_fc, b_fc):
    """Pure-JAX reference matching torch.nn.RNN(batch_first=True) + Linear."""
    B, T, D = x.shape
    H = w_ih.shape[0]
    h = jnp.zeros((B, H), jnp.float32)
    outs = []
    for t in range(T):
        h = jnp.tanh(x[:, t, :] @ w_ih.T + b_ih + h @ w_hh.T + b_hh)
        outs.append(h)
    hs = jnp.stack(outs, axis=1)                               # (B, T, H)
    return hs @ w_fc.T + b_fc


if __name__ == "__main__":
    # small shapes consistent with the module: hidden_size == input_size
    B, T = 2, 8
    input_size = 32          # => hidden_size = 32 (brain_embed_size)
    output_size = 16         # word_embed_size

    key = jax.random.PRNGKey(0)
    kx, k1, k2, k3, k4, k5, k6, kx2 = jax.random.split(key, 8)

    x = jax.random.normal(kx, (B, T, input_size), jnp.float32)

    H, D, O = input_size, input_size, output_size
    scale = 1.0 / jnp.sqrt(H)
    w_ih = jax.random.uniform(k1, (H, D), jnp.float32, -scale, scale)
    w_hh = jax.random.uniform(k2, (H, H), jnp.float32, -scale, scale)
    b_ih = jax.random.uniform(k3, (H,), jnp.float32, -scale, scale)
    b_hh = jax.random.uniform(k4, (H,), jnp.float32, -scale, scale)
    w_fc = jax.random.uniform(k5, (O, H), jnp.float32, -scale, scale)
    b_fc = jax.random.uniform(k6, (O,), jnp.float32, -scale, scale)

    # tolerance loosened vs. the pure-f32 reference because the recurrent
    # matmul runs in bf16 (per performance review); drift through tanh over T
    # steps stays well below this.
    tol = dict(atol=2e-2, rtol=2e-2)

    out = rnn_forward(x, w_ih, w_hh, b_ih, b_hh, w_fc, b_fc)
    out = jax.block_until_ready(out)
    ref = rnn_reference(x, w_ih, w_hh, b_ih, b_hh, w_fc, b_fc)
    assert out.shape == (B, T, output_size)
    assert jnp.allclose(out, ref, **tol), "mismatch vs reference"

    # exercise the awkward-T padding path and the batch-block (megacore) axis
    T2 = 7
    x2 = jax.random.normal(kx2, (B, T2, input_size), jnp.float32)
    out2 = rnn_forward(x2, w_ih, w_hh, b_ih, b_hh, w_fc, b_fc,
                       time_chunk=4, num_batch_blocks=2)
    out2 = jax.block_until_ready(out2)
    ref2 = rnn_reference(x2, w_ih, w_hh, b_ih, b_hh, w_fc, b_fc)
    assert out2.shape == (B, T2, output_size)
    assert jnp.allclose(out2, ref2, **tol), "mismatch vs reference (padded T / batch blocks)"

    print("KERNEL_OK")
</pallas_src>

<mosaic_0001>
module attributes {stable_mosaic.version = 11 : i64} {
  func.func @rnn_kernel(%arg0: i32, %arg1: i32, %arg2: memref<64x32xf32, #tpu.memory_space<vmem>>, %arg3: memref<32x32xf32, #tpu.memory_space<vmem>>, %arg4: memref<32x32xbf16, #tpu.memory_space<vmem>>, %arg5: memref<1x32xf32, #tpu.memory_space<vmem>>, %arg6: memref<32x16xf32, #tpu.memory_space<vmem>>, %arg7: memref<1x16xf32, #tpu.memory_space<vmem>>, %arg8: memref<64x16xf32, #tpu.memory_space<vmem>>, %arg9: memref<8x32xbf16, #tpu.memory_space<vmem>>, %arg10: memref<64x32xf32, #tpu.memory_space<vmem>>) attributes {dimension_semantics = [#tpu.dimension_semantics<parallel>, #tpu.dimension_semantics<arbitrary>], iteration_bounds = array<i64: 1, 1>, scalar_prefetch = 0 : i64, scratch_operands = 2 : i64, tpu.core_type = #tpu.core_type<tc>, window_params = [{transform_indices = @transform_0, window_bounds = array<i64: 64, 32>}, {pipeline_mode = #tpu.pipeline_mode<synchronous>, transform_indices = @transform_1, window_bounds = array<i64: 32, 32>}, {pipeline_mode = #tpu.pipeline_mode<synchronous>, transform_indices = @transform_2, window_bounds = array<i64: 32, 32>}, {pipeline_mode = #tpu.pipeline_mode<synchronous>, transform_indices = @transform_3, window_bounds = array<i64: 1, 32>}, {pipeline_mode = #tpu.pipeline_mode<synchronous>, transform_indices = @transform_4, window_bounds = array<i64: 32, 16>}, {pipeline_mode = #tpu.pipeline_mode<synchronous>, transform_indices = @transform_5, window_bounds = array<i64: 1, 16>}, {transform_indices = @transform_6, window_bounds = array<i64: 64, 16>}]} {
    %c0_i32 = arith.constant 0 : i32
    %0 = arith.cmpi eq, %arg1, %c0_i32 : i32
    %1 = arith.extui %0 : i1 to i32
    %c0_i32_0 = arith.constant 0 : i32
    %2 = arith.cmpi ne, %1, %c0_i32_0 : i32
    scf.if %2 {
      %cst_56 = arith.constant 0.000000e+00 : bf16
      %100 = vector.broadcast %cst_56 : bf16 to vector<8x32xbf16>
      %c0_57 = arith.constant 0 : index
      %c0_58 = arith.constant 0 : index
      %101 = vector.load %arg9[%c0_57, %c0_58] : memref<8x32xbf16, #tpu.memory_space<vmem>>, vector<8x32xbf16>
      tpu.vector_store %arg9[%c0_57, %c0_58], %100 {strides = array<i32>} : memref<8x32xbf16, #tpu.memory_space<vmem>>, vector<8x32xbf16>,
    } else {
    }
    %c0 = arith.constant 0 : index
    %c0_1 = arith.constant 0 : index
    %3 = vector.load %arg2[%c0, %c0_1] : memref<64x32xf32, #tpu.memory_space<vmem>>, vector<64x32xf32>
    %c0_2 = arith.constant 0 : index
    %c0_3 = arith.constant 0 : index
    %4 = vector.load %arg3[%c0_2, %c0_3] : memref<32x32xf32, #tpu.memory_space<vmem>>, vector<32x32xf32>
    %cst = arith.constant dense<0.000000e+00> : vector<64x32xf32>
    %5 = tpu.matmul %3, %4, %cst {dimension_numbers = #tpu.dot_dimension_numbers<[1], [0], [0], [1], [0, 0, 1, 1], [], []>} : vector<64x32xf32>, vector<32x32xf32>, vector<64x32xf32> -> vector<64x32xf32>
    %c0_4 = arith.constant 0 : index
    %c0_5 = arith.constant 0 : index
    %6 = vector.load %arg5[%c0_4, %c0_5] : memref<1x32xf32, #tpu.memory_space<vmem>>, vector<1x32xf32>
    %7 = vector.broadcast %6 : vector<1x32xf32> to vector<64x32xf32>
    %8 = arith.addf %5, %7 : vector<64x32xf32>
    %c0_6 = arith.constant 0 : index
    %c0_7 = arith.constant 0 : index
    %9 = vector.load %arg10[%c0_6, %c0_7] : memref<64x32xf32, #tpu.memory_space<vmem>>, vector<64x32xf32>
    tpu.vector_store %arg10[%c0_6, %c0_7], %8 {strides = array<i32>} : memref<64x32xf32, #tpu.memory_space<vmem>>, vector<64x32xf32>,
    %c0_8 = arith.constant 0 : index
    %c0_9 = arith.constant 0 : index
    %10 = vector.load %arg4[%c0_8, %c0_9] : memref<32x32xbf16, #tpu.memory_space<vmem>>, vector<32x32xbf16>
    %c0_10 = arith.constant 0 : index
    %c0_11 = arith.constant 0 : index
    %11 = vector.load %arg9[%c0_10, %c0_11] : memref<8x32xbf16, #tpu.memory_space<vmem>>, vector<8x32xbf16>
    %c0_i32_12 = arith.constant 0 : i32
    %c8_i32 = arith.constant 8 : i32
    %12 = arith.muli %c0_i32_12, %c8_i32 : i32
    %13 = tpu.assume_multiple %12, 8 : i32
    %14 = arith.index_cast %13 : i32 to index
    %c0_13 = arith.constant 0 : index
    %15 = vector.load %arg10[%14, %c0_13] : memref<64x32xf32, #tpu.memory_space<vmem>>, vector<8x32xf32>
    %cst_14 = arith.constant dense<0.000000e+00> : vector<8x32xf32>
    %16 = tpu.matmul %11, %10, %cst_14 {dimension_numbers = #tpu.dot_dimension_numbers<[1], [0], [0], [1], [0, 0, 1, 1], [], []>} : vector<8x32xbf16>, vector<32x32xbf16>, vector<8x32xf32> -> vector<8x32xf32>
    %17 = arith.addf %15, %16 : vector<8x32xf32>
    %18 = math.tanh %17 : vector<8x32xf32>
    %19 = arith.index_cast %13 : i32 to index
    %c0_15 = arith.constant 0 : index
    %20 = vector.load %arg10[%19, %c0_15] : memref<64x32xf32, #tpu.memory_space<vmem>>, vector<8x32xf32>
    tpu.vector_store %arg10[%19, %c0_15], %18 {strides = array<i32>} : memref<64x32xf32, #tpu.memory_space<vmem>>, vector<8x32xf32>,
    %21 = arith.truncf %18 : vector<8x32xf32> to vector<8x32xbf16>
    %c1_i32 = arith.constant 1 : i32
    %c8_i32_16 = arith.constant 8 : i32
    %22 = arith.muli %c1_i32, %c8_i32_16 : i32
    %23 = tpu.assume_multiple %22, 8 : i32
    %24 = arith.index_cast %23 : i32 to index
    %c0_17 = arith.constant 0 : index
    %25 = vector.load %arg10[%24, %c0_17] : memref<64x32xf32, #tpu.memory_space<vmem>>, vector<8x32xf32>
    %cst_18 = arith.constant dense<0.000000e+00> : vector<8x32xf32>
    %26 = tpu.matmul %21, %10, %cst_18 {dimension_numbers = #tpu.dot_dimension_numbers<[1], [0], [0], [1], [0, 0, 1, 1], [], []>} : vector<8x32xbf16>, vector<32x32xbf16>, vector<8x32xf32> -> vector<8x32xf32>
    %27 = arith.addf %25, %26 : vector<8x32xf32>
    %28 = math.tanh %27 : vector<8x32xf32>
    %29 = arith.index_cast %23 : i32 to index
    %c0_19 = arith.constant 0 : index
    %30 = vector.load %arg10[%29, %c0_19] : memref<64x32xf32, #tpu.memory_space<vmem>>, vector<8x32xf32>
    tpu.vector_store %arg10[%29, %c0_19], %28 {strides = array<i32>} : memref<64x32xf32, #tpu.memory_space<vmem>>, vector<8x32xf32>,
    %31 = arith.truncf %28 : vector<8x32xf32> to vector<8x32xbf16>
    %c2_i32 = arith.constant 2 : i32
    %c8_i32_20 = arith.constant 8 : i32
    %32 = arith.muli %c2_i32, %c8_i32_20 : i32
    %33 = tpu.assume_multiple %32, 8 : i32
    %34 = arith.index_cast %33 : i32 to index
    %c0_21 = arith.constant 0 : index
    %35 = vector.load %arg10[%34, %c0_21] : memref<64x32xf32, #tpu.memory_space<vmem>>, vector<8x32xf32>
    %cst_22 = arith.constant dense<0.000000e+00> : vector<8x32xf32>
    %36 = tpu.matmul %31, %10, %cst_22 {dimension_numbers = #tpu.dot_dimension_numbers<[1], [0], [0], [1], [0, 0, 1, 1], [], []>} : vector<8x32xbf16>, vector<32x32xbf16>, vector<8x32xf32> -> vector<8x32xf32>
    %37 = arith.addf %35, %36 : vector<8x32xf32>
    %38 = math.tanh %37 : vector<8x32xf32>
    %39 = arith.index_cast %33 : i32 to index
    %c0_23 = arith.constant 0 : index
    %40 = vector.load %arg10[%39, %c0_23] : memref<64x32xf32, #tpu.memory_space<vmem>>, vector<8x32xf32>
    tpu.vector_store %arg10[%39, %c0_23], %38 {strides = array<i32>} : memref<64x32xf32, #tpu.memory_space<vmem>>, vector<8x32xf32>,
    %41 = arith.truncf %38 : vector<8x32xf32> to vector<8x32xbf16>
    %c3_i32 = arith.constant 3 : i32
    %c8_i32_24 = arith.constant 8 : i32
    %42 = arith.muli %c3_i32, %c8_i32_24 : i32
    %43 = tpu.assume_multiple %42, 8 : i32
    %44 = arith.index_cast %43 : i32 to index
    %c0_25 = arith.constant 0 : index
    %45 = vector.load %arg10[%44, %c0_25] : memref<64x32xf32, #tpu.memory_space<vmem>>, vector<8x32xf32>
    %cst_26 = arith.constant dense<0.000000e+00> : vector<8x32xf32>
    %46 = tpu.matmul %41, %10, %cst_26 {dimension_numbers = #tpu.dot_dimension_numbers<[1], [0], [0], [1], [0, 0, 1, 1], [], []>} : vector<8x32xbf16>, vector<32x32xbf16>, vector<8x32xf32> -> vector<8x32xf32>
    %47 = arith.addf %45, %46 : vector<8x32xf32>
    %48 = math.tanh %47 : vector<8x32xf32>
    %49 = arith.index_cast %43 : i32 to index
    %c0_27 = arith.constant 0 : index
    %50 = vector.load %arg10[%49, %c0_27] : memref<64x32xf32, #tpu.memory_space<vmem>>, vector<8x32xf32>
    tpu.vector_store %arg10[%49, %c0_27], %48 {strides = array<i32>} : memref<64x32xf32, #tpu.memory_space<vmem>>, vector<8x32xf32>,
    %51 = arith.truncf %48 : vector<8x32xf32> to vector<8x32xbf16>
    %c4_i32 = arith.constant 4 : i32
    %c8_i32_28 = arith.constant 8 : i32
    %52 = arith.muli %c4_i32, %c8_i32_28 : i32
    %53 = tpu.assume_multiple %52, 8 : i32
    %54 = arith.index_cast %53 : i32 to index
    %c0_29 = arith.constant 0 : index
    %55 = vector.load %arg10[%54, %c0_29] : memref<64x32xf32, #tpu.memory_space<vmem>>, vector<8x32xf32>
    %cst_30 = arith.constant dense<0.000000e+00> : vector<8x32xf32>
    %56 = tpu.matmul %51, %10, %cst_30 {dimension_numbers = #tpu.dot_dimension_numbers<[1], [0], [0], [1], [0, 0, 1, 1], [], []>} : vector<8x32xbf16>, vector<32x32xbf16>, vector<8x32xf32> -> vector<8x32xf32>
    %57 = arith.addf %55, %56 : vector<8x32xf32>
    %58 = math.tanh %57 : vector<8x32xf32>
    %59 = arith.index_cast %53 : i32 to index
    %c0_31 = arith.constant 0 : index
    %60 = vector.load %arg10[%59, %c0_31] : memref<64x32xf32, #tpu.memory_space<vmem>>, vector<8x32xf32>
    tpu.vector_store %arg10[%59, %c0_31], %58 {strides = array<i32>} : memref<64x32xf32, #tpu.memory_space<vmem>>, vector<8x32xf32>,
    %61 = arith.truncf %58 : vector<8x32xf32> to vector<8x32xbf16>
    %c5_i32 = arith.constant 5 : i32
    %c8_i32_32 = arith.constant 8 : i32
    %62 = arith.muli %c5_i32, %c8_i32_32 : i32
    %63 = tpu.assume_multiple %62, 8 : i32
    %64 = arith.index_cast %63 : i32 to index
    %c0_33 = arith.constant 0 : index
    %65 = vector.load %arg10[%64, %c0_33] : memref<64x32xf32, #tpu.memory_space<vmem>>, vector<8x32xf32>
    %cst_34 = arith.constant dense<0.000000e+00> : vector<8x32xf32>
    %66 = tpu.matmul %61, %10, %cst_34 {dimension_numbers = #tpu.dot_dimension_numbers<[1], [0], [0], [1], [0, 0, 1, 1], [], []>} : vector<8x32xbf16>, vector<32x32xbf16>, vector<8x32xf32> -> vector<8x32xf32>
    %67 = arith.addf %65, %66 : vector<8x32xf32>
    %68 = math.tanh %67 : vector<8x32xf32>
    %69 = arith.index_cast %63 : i32 to index
    %c0_35 = arith.constant 0 : index
    %70 = vector.load %arg10[%69, %c0_35] : memref<64x32xf32, #tpu.memory_space<vmem>>, vector<8x32xf32>
    tpu.vector_store %arg10[%69, %c0_35], %68 {strides = array<i32>} : memref<64x32xf32, #tpu.memory_space<vmem>>, vector<8x32xf32>,
    %71 = arith.truncf %68 : vector<8x32xf32> to vector<8x32xbf16>
    %c6_i32 = arith.constant 6 : i32
    %c8_i32_36 = arith.constant 8 : i32
    %72 = arith.muli %c6_i32, %c8_i32_36 : i32
    %73 = tpu.assume_multiple %72, 8 : i32
    %74 = arith.index_cast %73 : i32 to index
    %c0_37 = arith.constant 0 : index
    %75 = vector.load %arg10[%74, %c0_37] : memref<64x32xf32, #tpu.memory_space<vmem>>, vector<8x32xf32>
    %cst_38 = arith.constant dense<0.000000e+00> : vector<8x32xf32>
    %76 = tpu.matmul %71, %10, %cst_38 {dimension_numbers = #tpu.dot_dimension_numbers<[1], [0], [0], [1], [0, 0, 1, 1], [], []>} : vector<8x32xbf16>, vector<32x32xbf16>, vector<8x32xf32> -> vector<8x32xf32>
    %77 = arith.addf %75, %76 : vector<8x32xf32>
    %78 = math.tanh %77 : vector<8x32xf32>
    %79 = arith.index_cast %73 : i32 to index
    %c0_39 = arith.constant 0 : index
    %80 = vector.load %arg10[%79, %c0_39] : memref<64x32xf32, #tpu.memory_space<vmem>>, vector<8x32xf32>
    tpu.vector_store %arg10[%79, %c0_39], %78 {strides = array<i32>} : memref<64x32xf32, #tpu.memory_space<vmem>>, vector<8x32xf32>,
    %81 = arith.truncf %78 : vector<8x32xf32> to vector<8x32xbf16>
    %c7_i32 = arith.constant 7 : i32
    %c8_i32_40 = arith.constant 8 : i32
    %82 = arith.muli %c7_i32, %c8_i32_40 : i32
    %83 = tpu.assume_multiple %82, 8 : i32
    %84 = arith.index_cast %83 : i32 to index
    %c0_41 = arith.constant 0 : index
    %85 = vector.load %arg10[%84, %c0_41] : memref<64x32xf32, #tpu.memory_space<vmem>>, vector<8x32xf32>
    %cst_42 = arith.constant dense<0.000000e+00> : vector<8x32xf32>
    %86 = tpu.matmul %81, %10, %cst_42 {dimension_numbers = #tpu.dot_dimension_numbers<[1], [0], [0], [1], [0, 0, 1, 1], [], []>} : vector<8x32xbf16>, vector<32x32xbf16>, vector<8x32xf32> -> vector<8x32xf32>
    %87 = arith.addf %85, %86 : vector<8x32xf32>
    %88 = math.tanh %87 : vector<8x32xf32>
    %89 = arith.index_cast %83 : i32 to index
    %c0_43 = arith.constant 0 : index
    %90 = vector.load %arg10[%89, %c0_43] : memref<64x32xf32, #tpu.memory_space<vmem>>, vector<8x32xf32>
    tpu.vector_store %arg10[%89, %c0_43], %88 {strides = array<i32>} : memref<64x32xf32, #tpu.memory_space<vmem>>, vector<8x32xf32>,
    %91 = arith.truncf %88 : vector<8x32xf32> to vector<8x32xbf16>
    %c8_i32_44 = arith.constant 8 : i32
    %c0_45 = arith.constant 0 : index
    %c0_46 = arith.constant 0 : index
    %92 = vector.load %arg9[%c0_45, %c0_46] : memref<8x32xbf16, #tpu.memory_space<vmem>>, vector<8x32xbf16>
    tpu.vector_store %arg9[%c0_45, %c0_46], %91 {strides = array<i32>} : memref<8x32xbf16, #tpu.memory_space<vmem>>, vector<8x32xbf16>,
    %c0_47 = arith.constant 0 : index
    %c0_48 = arith.constant 0 : index
    %93 = vector.load %arg10[%c0_47, %c0_48] : memref<64x32xf32, #tpu.memory_space<vmem>>, vector<64x32xf32>
    %c0_49 = arith.constant 0 : index
    %c0_50 = arith.constant 0 : index
    %94 = vector.load %arg6[%c0_49, %c0_50] : memref<32x16xf32, #tpu.memory_space<vmem>>, vector<32x16xf32>
    %cst_51 = arith.constant dense<0.000000e+00> : vector<64x16xf32>
    %95 = tpu.matmul %93, %94, %cst_51 {dimension_numbers = #tpu.dot_dimension_numbers<[1], [0], [0], [1], [0, 0, 1, 1], [], []>} : vector<64x32xf32>, vector<32x16xf32>, vector<64x16xf32> -> vector<64x16xf32>
    %c0_52 = arith.constant 0 : index
    %c0_53 = arith.constant 0 : index
    %96 = vector.load %arg7[%c0_52, %c0_53] : memref<1x16xf32, #tpu.memory_space<vmem>>, vector<1x16xf32>
    %97 = vector.broadcast %96 : vector<1x16xf32> to vector<64x16xf32>
    %98 = arith.addf %95, %97 : vector<64x16xf32>
    %c0_54 = arith.constant 0 : index
    %c0_55 = arith.constant 0 : index
    %99 = vector.load %arg8[%c0_54, %c0_55] : memref<64x16xf32, #tpu.memory_space<vmem>>, vector<64x16xf32>
    tpu.vector_store %arg8[%c0_54, %c0_55], %98 {strides = array<i32>} : memref<64x16xf32, #tpu.memory_space<vmem>>, vector<64x16xf32>,
    return
  }
  func.func @transform_0(%arg0: i32, %arg1: i32) -> (i32, i32) {
    %c1_i32 = arith.constant 1 : i32
    %0 = arith.muli %arg0, %c1_i32 : i32
    %1 = arith.addi %0, %arg1 : i32
    %c0_i32 = arith.constant 0 : i32
    %c0_i32_0 = arith.constant 0 : i32
    return %1, %c0_i32 : i32, i32
  }
  func.func @transform_1(%arg0: i32, %arg1: i32) -> (i32, i32) {
    %c0_i32 = arith.constant 0 : i32
    %c0_i32_0 = arith.constant 0 : i32
    %c0_i32_1 = arith.constant 0 : i32
    return %c0_i32, %c0_i32_0 : i32, i32
  }
  func.func @transform_2(%arg0: i32, %arg1: i32) -> (i32, i32) {
    %c0_i32 = arith.constant 0 : i32
    %c0_i32_0 = arith.constant 0 : i32
    %c0_i32_1 = arith.constant 0 : i32
    return %c0_i32, %c0_i32_0 : i32, i32
  }
  func.func @transform_3(%arg0: i32, %arg1: i32) -> (i32, i32) {
    %c0_i32 = arith.constant 0 : i32
    %c0_i32_0 = arith.constant 0 : i32
    %c0_i32_1 = arith.constant 0 : i32
    return %c0_i32, %c0_i32_0 : i32, i32
  }
  func.func @transform_4(%arg0: i32, %arg1: i32) -> (i32, i32) {
    %c0_i32 = arith.constant 0 : i32
    %c0_i32_0 = arith.constant 0 : i32
    %c0_i32_1 = arith.constant 0 : i32
    return %c0_i32, %c0_i32_0 : i32, i32
  }
  func.func @transform_5(%arg0: i32, %arg1: i32) -> (i32, i32) {
    %c0_i32 = arith.constant 0 : i32
    %c0_i32_0 = arith.constant 0 : i32
    %c0_i32_1 = arith.constant 0 : i32
    return %c0_i32, %c0_i32_0 : i32, i32
  }
  func.func @transform_6(%arg0: i32, %arg1: i32) -> (i32, i32) {
    %c1_i32 = arith.constant 1 : i32
    %0 = arith.muli %arg0, %c1_i32 : i32
    %1 = arith.addi %0, %arg1 : i32
    %c0_i32 = arith.constant 0 : i32
    %c0_i32_0 = arith.constant 0 : i32
    return %1, %c0_i32 : i32, i32
  }
}

</mosaic_0001>

<llo_original>
// kernel: tpu_custom_call.1
$region0: #{tpu_custom_call.1}
  #allocation0 [shape = 'u32[]', space=smem, size = 0x4, offset = 0x4, fixed_abs, tag = 'smem constant byte address 0x4 - core index']
  #allocation1 [shape = 'u32[144,128]{1,0:T(1,128)}', space=vmem, size = 0x12000, scoped, tag = 'internal scratch']
  #allocation2 [shape = 'bf16[8,32]{1,0:T(8,128)(2,1)}', space=vmem, size = 0x800, scoped, tag = 'scratch operand']
  #allocation3 [shape = 'f32[64,32]{1,0:T(8,128)}', space=vmem, size = 0x8000, scoped, tag = 'scratch operand']
  %s0 = inlined_call_operand.vmem [shape: f32[64,32], index: 0, kind: input, shape index: {}]
  %s1 = inlined_call_operand.vmem [shape: f32[32,32], index: 1, kind: input, shape index: {}]
  %s2 = inlined_call_operand.vmem [shape: bf16[32,32], index: 2, kind: input, shape index: {}]
  %s3 = inlined_call_operand.vmem [shape: f32[1,32], index: 3, kind: input, shape index: {}]
  %s4 = inlined_call_operand.vmem [shape: f32[32,16], index: 4, kind: input, shape index: {}]
  %s5 = inlined_call_operand.vmem [shape: f32[1,16], index: 5, kind: input, shape index: {}]
  %s6 = inlined_call_operand.vmem [shape: f32[64,16], index: 6, kind: output, shape index: {}]
  %s7 = sld [smem:[#allocation0]]
  $region38: #{tpu_custom_call.1} parent=0
    _
  %s9 = ssub.s32 1, %s7
  %s10 = scalar_select 0, %s9, %s7
  // Predicated region
  $region2: #{tpu_custom_call.1} parent=0 // pred_check
    _
  $region3: #{tpu_custom_call.1} parent=0 // pred_check_branch
    %12 = sbr.rel (0) target = $region5
  $region4: #{tpu_custom_call.1} parent=0 // pred_region
    %s13 = sadd.s32 0, 0
    %s14 = smul.u32 8, %s13
    %p15 = scmp.lt.s32.totalorder %s14, 7
    %s16 = scalar_select %p15, %s14, 7
    %s17 = smul.addr %s16, 8
    %s18 = scalar_lea.vmem %s0, %s17
    %s19 = sadd.s32 0, 0
    %s20 = smul.u32 8, %s19
  $region5: #{tpu_custom_call.1} parent=0 // pred_fallthru
    _
  // Predicated region
  $region6: #{tpu_custom_call.1} parent=0 // pred_check
    _
  $region7: #{tpu_custom_call.1} parent=0 // pred_check_branch
    %22 = sbr.rel (0) target = $region9
  $region8: #{tpu_custom_call.1} parent=0 // pred_region
    _
  $region9: #{tpu_custom_call.1} parent=0 // pred_fallthru
    _
  // Predicated region
  $region10: #{tpu_custom_call.1} parent=0 // pred_check
    _
  $region11: #{tpu_custom_call.1} parent=0 // pred_check_branch
    %24 = sbr.rel (0) target = $region13
  $region12: #{tpu_custom_call.1} parent=0 // pred_region
    _
  $region13: #{tpu_custom_call.1} parent=0 // pred_fallthru
    _
  // Predicated region
  $region14: #{tpu_custom_call.1} parent=0 // pred_check
    _
  $region15: #{tpu_custom_call.1} parent=0 // pred_check_branch
    %26 = sbr.rel (0) target = $region17
  $region16: #{tpu_custom_call.1} parent=0 // pred_region
    _
  $region17: #{tpu_custom_call.1} parent=0 // pred_fallthru
    _
  // Predicated region
  $region18: #{tpu_custom_call.1} parent=0 // pred_check
    _
  $region19: #{tpu_custom_call.1} parent=0 // pred_check_branch
    %28 = sbr.rel (0) target = $region21
  $region20: #{tpu_custom_call.1} parent=0 // pred_region
    _
  $region21: #{tpu_custom_call.1} parent=0 // pred_fallthru
    _
  // Predicated region
  $region22: #{tpu_custom_call.1} parent=0 // pred_check
    _
  $region23: #{tpu_custom_call.1} parent=0 // pred_check_branch
    %30 = sbr.rel (0) target = $region25
  $region24: #{tpu_custom_call.1} parent=0 // pred_region
    _
  $region25: #{tpu_custom_call.1} parent=0 // pred_fallthru
    _
  %s31 = sadd.s32 0, 0
  %s32 = smul.u32 8, %s31
  %p33 = scmp.lt.s32.totalorder %s32, 7
  %s34 = scalar_select %p33, %s32, 7
  %s35 = smul.addr %s34, 8
  %s36 = scalar_lea.vmem %s0, %s35
  %s37 = sadd.s32 0, 0
  %s38 = smul.u32 8, %s37
  %p39 = scmp.lt.s32.totalorder %s38, 7
  %s40 = scalar_select %p39, %s38, 7
  %s41 = smul.addr %s40, 8
  %s42 = scalar_lea.vmem %s6, %s41
  %s43 = sadd.s32 0, 0
  %s44 = smul.u32 8, %s43
  %p45 = scmp.lt.s32.totalorder %s44, 7
  %s46 = scalar_select %p45, %s44, 7
  %s47 = smul.addr %s46, 8
  %s48 = scalar_lea.vmem %s0, %s47
  %s49 = sadd.s32 0, 0
  %s50 = smul.u32 8, %s49
  %s51 = sadd.s32 0, 0
  %s52 = smul.u32 8, %s51
  %p53 = scmp.lt.s32.totalorder %s52, 7
  %s54 = scalar_select %p53, %s52, 7
  %s55 = smul.addr %s54, 8
  %s56 = scalar_lea.vmem %s6, %s55
  %s57 = sadd.s32 0, 0
  %s58 = smul.u32 8, %s57
  %p60 = scmp.eq.s32.totalorder 0, 0
  // Predicated region
  $region26: #{tpu_custom_call.1} parent=0 // pred_check
    %p61 = pneg %p60
  $region27: #{tpu_custom_call.1} parent=0 // pred_check_branch
    %63 = sbr.rel (%p61) target = $region29
  $region28: #{tpu_custom_call.1} parent=0 // pred_region
    %vm64 = vcmask 257024
    %65 = vst.msk [vmem:[#allocation2] sm:$0xf] %vm64, 0
  $region29: #{tpu_custom_call.1} parent=0 // pred_fallthru
    _
  %v66 = vld [vmem:[%s48] sm:$0xff]
  %v67 = vld [vmem:[%s48 + $0x8] sm:$0xff]
  %v68 = vld [vmem:[%s48 + $0x10] sm:$0xff]
  %v69 = vld [vmem:[%s48 + $0x18] sm:$0xff]
  %v70 = vld [vmem:[%s48 + $0x20] sm:$0xff]
  %v71 = vld [vmem:[%s48 + $0x28] sm:$0xff]
  %v72 = vld [vmem:[%s48 + $0x30] sm:$0xff]
  %v73 = vld [vmem:[%s48 + $0x38] sm:$0xff]
  %v74 = vld [vmem:[%s1] sm:$0xff]
  %v75 = vld [vmem:[%s1 + $0x8] sm:$0xff]
  %v76 = vld [vmem:[%s1 + $0x10] sm:$0xff]
  %v77 = vld [vmem:[%s1 + $0x18] sm:$0xff]
  %v78 = vld [vmem:[%s3] sm:$0x1]
  %v80 = vlaneseq
  %v81 = vshrl.u32 %v80, 7
  %v82 = vsub.s32 0, %v81
  %v83 = vrot.slane %v78, %v82
  %vm85 = vcmask 261120
  %v87 = vsel %vm85, %v66, 0
  %v90 = vsel %vm85, %v67, 0
  %v93 = vsel %vm85, %v68, 0
  %v96 = vsel %vm85, %v69, 0
  %v99 = vsel %vm85, %v70, 0
  %v102 = vsel %vm85, %v71, 0
  %v105 = vsel %vm85, %v72, 0
  %v108 = vsel %vm85, %v73, 0
  %110 = vmatprep.subr.mxu0 0.0
  %111 = vmatpush1.msra.mxu0 %v74
  %112 = vmatprep.subr.mxu0 0.0
  %113 = vmatpush1.msra.mxu0 %v75
  %114 = vmatprep.subr.mxu0 0.0
  %115 = vmatpush1.msra.mxu0 %v76
  %116 = vmatprep.subr.mxu0 0.0
  %117 = vmatpush1.msra.mxu0 %v77
  %118 = vmatprep.subr.mxu0 0.0
  %119 = vmatpush1.msra.mxu0 0.0
  %120 = vmatprep.subr.mxu0 0.0
  %121 = vmatpush1.msra.mxu0 0.0
  %122 = vmatprep.subr.mxu0 0.0
  %123 = vmatpush1.msra.mxu0 0.0
  %124 = vmatprep.subr.mxu0 0.0
  %125 = vmatpush1.msra.mxu0 0.0
  %126 = vmatprep.subr.mxu0 0.0
  %127 = vmatpush1.msra.mxu0 0.0
  %128 = vmatprep.subr.mxu0 0.0
  %129 = vmatpush1.msra.mxu0 0.0
  %130 = vmatprep.subr.mxu0 0.0
  %131 = vmatpush1.msra.mxu0 0.0
  %132 = vmatprep.subr.mxu0 0.0
  %133 = vmatpush1.msra.mxu0 0.0
  %134 = vmatprep.subr.mxu0 0.0
  %135 = vmatpush1.msra.mxu0 0.0
  %136 = vmatprep.subr.mxu0 0.0
  %137 = vmatpush1.msra.mxu0 0.0
  %138 = vmatprep.subr.mxu0 0.0
  %139 = vmatpush1.msra.mxu0 0.0
  %140 = vmatprep.subr.mxu0 0.0
  %141 = vmatpush1.msra.mxu0 0.0
  %142 = vmatprep.subr.mxu0 0.0
  %143 = vmatpush1.msra.mxu0 0.0
  %144 = vmatprep.subr.mxu0 0.0
  %145 = vmatpush1.msra.mxu0 0.0
  %146 = vmatprep.subr.mxu0 0.0
  %147 = vmatpush1.msra.mxu0 0.0
  %148 = vmatprep.subr.mxu0 0.0
  %149 = vmatpush1.msra.mxu0 0.0
  %150 = vmatprep.subr.mxu0 0.0
  %151 = vmatpush1.msra.mxu0 0.0
  %152 = vmatprep.subr.mxu0 0.0
  %153 = vmatpush1.msra.mxu0 0.0
  %154 = vmatprep.subr.mxu0 0.0
  %155 = vmatpush1.msra.mxu0 0.0
  %156 = vmatprep.subr.mxu0 0.0
  %157 = vmatpush1.msra.mxu0 0.0
  %158 = vmatprep.subr.mxu0 0.0
  %159 = vmatpush1.msra.mxu0 0.0
  %160 = vmatprep.subr.mxu0 0.0
  %161 = vmatpush1.msra.mxu0 0.0
  %162 = vmatprep.subr.mxu0 0.0
  %163 = vmatpush1.msra.mxu0 0.0
  %164 = vmatprep.subr.mxu0 0.0
  %165 = vmatpush1.msra.mxu0 0.0
  %166 = vmatprep.subr.mxu0 0.0
  %167 = vmatpush1.msra.mxu0 0.0
  %168 = vmatprep.subr.mxu0 0.0
  %169 = vmatpush1.msra.mxu0 0.0
  %170 = vmatprep.subr.mxu0 0.0
  %171 = vmatpush1.msra.mxu0 0.0
  %172 = vmatprep.subr.mxu0 0.0
  %173 = vmatpush1.msra.mxu0 0.0
  %174 = vmatprep.mubr.f32.mxu0 0.0
  %175 = vmatmul.mubr.f32.gmra.mrb[0].mxu0 %v87
  %v176 = vpop.f32.mrb[0].mxu0
  %v177 = vadd.f32 %v83, %v176
  %v178 = vpop.f32.mrb[0].mxu0
  %179 = vmatprep.mubr.f32.mxu0 0.0
  %180 = vmatmul.mubr.f32.gmra.mrb[0].mxu0 %v90
  %v181 = vpop.f32.mrb[0].mxu0
  %v182 = vadd.f32 %v83, %v181
  %v183 = vpop.f32.mrb[0].mxu0
  %184 = vmatprep.mubr.f32.mxu0 0.0
  %185 = vmatmul.mubr.f32.gmra.mrb[0].mxu0 %v93
  %v186 = vpop.f32.mrb[0].mxu0
  %v187 = vadd.f32 %v83, %v186
  %v188 = vpop.f32.mrb[0].mxu0
  %189 = vmatprep.mubr.f32.mxu0 0.0
  %190 = vmatmul.mubr.f32.gmra.mrb[0].mxu0 %v96
  %v191 = vpop.f32.mrb[0].mxu0
  %v192 = vadd.f32 %v83, %v191
  %v193 = vpop.f32.mrb[0].mxu0
  %194 = vmatprep.mubr.f32.mxu0 0.0
  %195 = vmatmul.mubr.f32.gmra.mrb[0].mxu0 %v99
  %v196 = vpop.f32.mrb[0].mxu0
  %v197 = vadd.f32 %v83, %v196
  %v198 = vpop.f32.mrb[0].mxu0
  %199 = vmatprep.mubr.f32.mxu0 0.0
  %200 = vmatmul.mubr.f32.gmra.mrb[0].mxu0 %v102
  %v201 = vpop.f32.mrb[0].mxu0
  %v202 = vadd.f32 %v83, %v201
  %v203 = vpop.f32.mrb[0].mxu0
  %204 = vmatprep.mubr.f32.mxu0 0.0
  %205 = vmatmul.mubr.f32.gmra.mrb[0].mxu0 %v105
  %v206 = vpop.f32.mrb[0].mxu0
  %v207 = vadd.f32 %v83, %v206
  %v208 = vpop.f32.mrb[0].mxu0
  %209 = vmatprep.mubr.f32.mxu0 0.0
  %210 = vmatmul.mubr.f32.gmra.mrb[0].mxu0 %v108
  %v211 = vpop.f32.mrb[0].mxu0
  %v212 = vadd.f32 %v83, %v211
  %v213 = vpop.f32.mrb[0].mxu0
  %214 = vdwg.mxu0
  %215 = vst.msk [vmem:[#allocation3] sm:$0xff] %vm85, %v177
  %216 = vst.msk [vmem:[#allocation3 + $0x8] sm:$0xff] %vm85, %v182
  %217 = vst.msk [vmem:[#allocation3 + $0x10] sm:$0xff] %vm85, %v187
  %218 = vst.msk [vmem:[#allocation3 + $0x18] sm:$0xff] %vm85, %v192
  %219 = vst.msk [vmem:[#allocation3 + $0x20] sm:$0xff] %vm85, %v197
  %220 = vst.msk [vmem:[#allocation3 + $0x28] sm:$0xff] %vm85, %v202
  %221 = vst.msk [vmem:[#allocation3 + $0x30] sm:$0xff] %vm85, %v207
  %222 = vst.msk [vmem:[#allocation3 + $0x38] sm:$0xff] %vm85, %v212
  %v223 = vld [vmem:[%s2] sm:$0xf]
  %v224 = vld [vmem:[%s2 + $0x4] sm:$0xf]
  %v225 = vld [vmem:[%s2 + $0x8] sm:$0xf]
  %v226 = vld [vmem:[%s2 + $0xc] sm:$0xf]
  %v227 = vld [vmem:[#allocation2] sm:$0xf]
  %v228 = vld [vmem:[#allocation3] sm:$0xff]
  %v233 = vunpack.c.l.b16 %v223
  %v234 = vunpack.c.l.b16 %v224
  %v235 = vunpack.c.l.b16 %v225
  %v236 = vunpack.c.l.b16 %v226
  %v237 = vpack.c.b16 %v234, %v233
  %v238 = vpack.c.b16 %v236, %v235
  %v242 = vsel %vm85, %v227, 0
  %244 = vmatprep.subr.bf16.mxu0 0
  %245 = vmatpush1.bf16.msra.mxu0 %v237
  %246 = vmatprep.subr.bf16.mxu0 0
  %247 = vmatpush1.bf16.msra.mxu0 %v238
  %248 = vmatprep.subr.bf16.mxu0 0
  %249 = vmatpush1.bf16.msra.mxu0 0
  %250 = vmatprep.subr.bf16.mxu0 0
  %251 = vmatpush1.bf16.msra.mxu0 0
  %252 = vmatprep.subr.bf16.mxu0 0
  %253 = vmatpush1.bf16.msra.mxu0 0
  %254 = vmatprep.subr.bf16.mxu0 0
  %255 = vmatpush1.bf16.msra.mxu0 0
  %256 = vmatprep.subr.bf16.mxu0 0
  %257 = vmatpush1.bf16.msra.mxu0 0
  %258 = vmatprep.subr.bf16.mxu0 0
  %259 = vmatpush1.bf16.msra.mxu0 0
  %260 = vmatprep.subr.bf16.mxu0 0
  %261 = vmatpush1.bf16.msra.mxu0 0
  %262 = vmatprep.subr.bf16.mxu0 0
  %263 = vmatpush1.bf16.msra.mxu0 0
  %264 = vmatprep.subr.bf16.mxu0 0
  %265 = vmatpush1.bf16.msra.mxu0 0
  %266 = vmatprep.subr.bf16.mxu0 0
  %267 = vmatpush1.bf16.msra.mxu0 0
  %268 = vmatprep.subr.bf16.mxu0 0
  %269 = vmatpush1.bf16.msra.mxu0 0
  %270 = vmatprep.subr.bf16.mxu0 0
  %271 = vmatpush1.bf16.msra.mxu0 0
  %272 = vmatprep.subr.bf16.mxu0 0
  %273 = vmatpush1.bf16.msra.mxu0 0
  %274 = vmatprep.subr.bf16.mxu0 0
  %275 = vmatpush1.bf16.msra.mxu0 0
  %276 = vmatprep.mubr.bf16.mxu0 0
  %277 = vmatmul.mubr.bf16.gmra.mrb[0].mxu0 %v242
  %v278 = vpop.f32.mrb[0].mxu0
  %v279 = vadd.f32 0.0, %v278
  %v280 = vpop.f32.mrb[0].mxu0
  %v281 = vpop.f32.mrb[0].mxu0
  %v282 = vpop.f32.mrb[0].mxu0
  %283 = vdwg.mxu0
  %v284 = vadd.f32 %v228, %v279
  %v285 = vtanh.pop %v284
  %286 = vst.msk [vmem:[#allocation3] sm:$0xff] %vm85, %v285
  %v287 = vpack.c.bf16 %v285, %v285
  %s288 = scalar_lea.vmem [#allocation3], 8
  %v289 = vld [vmem:[%s288] sm:$0xff]
  %v291 = vsel %vm85, %v287, 0
  %293 = vmatprep.subr.bf16.mxu0 0
  %294 = vmatpush1.bf16.msra.mxu0 %v237
  %295 = vmatprep.subr.bf16.mxu0 0
  %296 = vmatpush1.bf16.msra.mxu0 %v238
  %297 = vmatprep.subr.bf16.mxu0 0
  %298 = vmatpush1.bf16.msra.mxu0 0
  %299 = vmatprep.subr.bf16.mxu0 0
  %300 = vmatpush1.bf16.msra.mxu0 0
  %301 = vmatprep.subr.bf16.mxu0 0
  %302 = vmatpush1.bf16.msra.mxu0 0
  %303 = vmatprep.subr.bf16.mxu0 0
  %304 = vmatpush1.bf16.msra.mxu0 0
  %305 = vmatprep.subr.bf16.mxu0 0
  %306 = vmatpush1.bf16.msra.mxu0 0
  %307 = vmatprep.subr.bf16.mxu0 0
  %308 = vmatpush1.bf16.msra.mxu0 0
  %309 = vmatprep.subr.bf16.mxu0 0
  %310 = vmatpush1.bf16.msra.mxu0 0
  %311 = vmatprep.subr.bf16.mxu0 0
  %312 = vmatpush1.bf16.msra.mxu0 0
  %313 = vmatprep.subr.bf16.mxu0 0
  %314 = vmatpush1.bf16.msra.mxu0 0
  %315 = vmatprep.subr.bf16.mxu0 0
  %316 = vmatpush1.bf16.msra.mxu0 0
  %317 = vmatprep.subr.bf16.mxu0 0
  %318 = vmatpush1.bf16.msra.mxu0 0
  %319 = vmatprep.subr.bf16.mxu0 0
  %320 = vmatpush1.bf16.msra.mxu0 0
  %321 = vmatprep.subr.bf16.mxu0 0
  %322 = vmatpush1.bf16.msra.mxu0 0
  %323 = vmatprep.subr.bf16.mxu0 0
  %324 = vmatpush1.bf16.msra.mxu0 0
  %325 = vmatprep.mubr.bf16.mxu0 0
  %326 = vmatmul.mubr.bf16.gmra.mrb[0].mxu0 %v291
  %v327 = vpop.f32.mrb[0].mxu0
  %v328 = vadd.f32 0.0, %v327
  %v329 = vpop.f32.mrb[0].mxu0
  %v330 = vpop.f32.mrb[0].mxu0
  %v331 = vpop.f32.mrb[0].mxu0
  %332 = vdwg.mxu0
  %v333 = vadd.f32 %v289, %v328
  %v334 = vtanh.pop %v333
  %335 = vst.msk [vmem:[%s288] sm:$0xff] %vm85, %v334
  %v336 = vpack.c.bf16 %v334, %v334
  %s337 = scalar_lea.vmem [#allocation3], 16
  %v338 = vld [vmem:[%s337] sm:$0xff]
  %v340 = vsel %vm85, %v336, 0
  %342 = vmatprep.subr.bf16.mxu0 0
  %343 = vmatpush1.bf16.msra.mxu0 %v237
  %344 = vmatprep.subr.bf16.mxu0 0
  %345 = vmatpush1.bf16.msra.mxu0 %v238
  %346 = vmatprep.subr.bf16.mxu0 0
  %347 = vmatpush1.bf16.msra.mxu0 0
  %348 = vmatprep.subr.bf16.mxu0 0
  %349 = vmatpush1.bf16.msra.mxu0 0
  %350 = vmatprep.subr.bf16.mxu0 0
  %351 = vmatpush1.bf16.msra.mxu0 0
  %352 = vmatprep.subr.bf16.mxu0 0
  %353 = vmatpush1.bf16.msra.mxu0 0
  %354 = vmatprep.subr.bf16.mxu0 0
  %355 = vmatpush1.bf16.msra.mxu0 0
  %356 = vmatprep.subr.bf16.mxu0 0
  %357 = vmatpush1.bf16.msra.mxu0 0
  %358 = vmatprep.subr.bf16.mxu0 0
  %359 = vmatpush1.bf16.msra.mxu0 0
  %360 = vmatprep.subr.bf16.mxu0 0
  %361 = vmatpush1.bf16.msra.mxu0 0
  %362 = vmatprep.subr.bf16.mxu0 0
  %363 = vmatpush1.bf16.msra.mxu0 0
  %364 = vmatprep.subr.bf16.mxu0 0
  %365 = vmatpush1.bf16.msra.mxu0 0
  %366 = vmatprep.subr.bf16.mxu0 0
  %367 = vmatpush1.bf16.msra.mxu0 0
  %368 = vmatprep.subr.bf16.mxu0 0
  %369 = vmatpush1.bf16.msra.mxu0 0
  %370 = vmatprep.subr.bf16.mxu0 0
  %371 = vmatpush1.bf16.msra.mxu0 0
  %372 = vmatprep.subr.bf16.mxu0 0
  %373 = vmatpush1.bf16.msra.mxu0 0
  %374 = vmatprep.mubr.bf16.mxu0 0
  %375 = vmatmul.mubr.bf16.gmra.mrb[0].mxu0 %v340
  %v376 = vpop.f32.mrb[0].mxu0
  %v377 = vadd.f32 0.0, %v376
  %v378 = vpop.f32.mrb[0].mxu0
  %v379 = vpop.f32.mrb[0].mxu0
  %v380 = vpop.f32.mrb[0].mxu0
  %381 = vdwg.mxu0
  %v382 = vadd.f32 %v338, %v377
  %v383 = vtanh.pop %v382
  %384 = vst.msk [vmem:[%s337] sm:$0xff] %vm85, %v383
  %v385 = vpack.c.bf16 %v383, %v383
  %s386 = scalar_lea.vmem [#allocation3], 24
  %v387 = vld [vmem:[%s386] sm:$0xff]
  %v389 = vsel %vm85, %v385, 0
  %391 = vmatprep.subr.bf16.mxu0 0
  %392 = vmatpush1.bf16.msra.mxu0 %v237
  %393 = vmatprep.subr.bf16.mxu0 0
  %394 = vmatpush1.bf16.msra.mxu0 %v238
  %395 = vmatprep.subr.bf16.mxu0 0
  %396 = vmatpush1.bf16.msra.mxu0 0
  %397 = vmatprep.subr.bf16.mxu0 0
  %398 = vmatpush1.bf16.msra.mxu0 0
  %399 = vmatprep.subr.bf16.mxu0 0
  %400 = vmatpush1.bf16.msra.mxu0 0
  %401 = vmatprep.subr.bf16.mxu0 0
  %402 = vmatpush1.bf16.msra.mxu0 0
  %403 = vmatprep.subr.bf16.mxu0 0
  %404 = vmatpush1.bf16.msra.mxu0 0
  %405 = vmatprep.subr.bf16.mxu0 0
  %406 = vmatpush1.bf16.msra.mxu0 0
  %407 = vmatprep.subr.bf16.mxu0 0
  %408 = vmatpush1.bf16.msra.mxu0 0
  %409 = vmatprep.subr.bf16.mxu0 0
  %410 = vmatpush1.bf16.msra.mxu0 0
  %411 = vmatprep.subr.bf16.mxu0 0
  %412 = vmatpush1.bf16.msra.mxu0 0
  %413 = vmatprep.subr.bf16.mxu0 0
  %414 = vmatpush1.bf16.msra.mxu0 0
  %415 = vmatprep.subr.bf16.mxu0 0
  %416 = vmatpush1.bf16.msra.mxu0 0
  %417 = vmatprep.subr.bf16.mxu0 0
  %418 = vmatpush1.bf16.msra.mxu0 0
  %419 = vmatprep.subr.bf16.mxu0 0
  %420 = vmatpush1.bf16.msra.mxu0 0
  %421 = vmatprep.subr.bf16.mxu0 0
  %422 = vmatpush1.bf16.msra.mxu0 0
  %423 = vmatprep.mubr.bf16.mxu0 0
  %424 = vmatmul.mubr.bf16.gmra.mrb[0].mxu0 %v389
  %v425 = vpop.f32.mrb[0].mxu0
  %v426 = vadd.f32 0.0, %v425
  %v427 = vpop.f32.mrb[0].mxu0
  %v428 = vpop.f32.mrb[0].mxu0
  %v429 = vpop.f32.mrb[0].mxu0
  %430 = vdwg.mxu0
  %v431 = vadd.f32 %v387, %v426
  %v432 = vtanh.pop %v431
  %433 = vst.msk [vmem:[%s386] sm:$0xff] %vm85, %v432
  %v434 = vpack.c.bf16 %v432, %v432
  %s435 = scalar_lea.vmem [#allocation3], 32
  %v436 = vld [vmem:[%s435] sm:$0xff]
  %v438 = vsel %vm85, %v434, 0
  %440 = vmatprep.subr.bf16.mxu0 0
  %441 = vmatpush1.bf16.msra.mxu0 %v237
  %442 = vmatprep.subr.bf16.mxu0 0
  %443 = vmatpush1.bf16.msra.mxu0 %v238
  %444 = vmatprep.subr.bf16.mxu0 0
  %445 = vmatpush1.bf16.msra.mxu0 0
  %446 = vmatprep.subr.bf16.mxu0 0
  %447 = vmatpush1.bf16.msra.mxu0 0
  %448 = vmatprep.subr.bf16.mxu0 0
  %449 = vmatpush1.bf16.msra.mxu0 0
  %450 = vmatprep.subr.bf16.mxu0 0
  %451 = vmatpush1.bf16.msra.mxu0 0
  %452 = vmatprep.subr.bf16.mxu0 0
  %453 = vmatpush1.bf16.msra.mxu0 0
  %454 = vmatprep.subr.bf16.mxu0 0
  %455 = vmatpush1.bf16.msra.mxu0 0
  %456 = vmatprep.subr.bf16.mxu0 0
  %457 = vmatpush1.bf16.msra.mxu0 0
  %458 = vmatprep.subr.bf16.mxu0 0
  %459 = vmatpush1.bf16.msra.mxu0 0
  %460 = vmatprep.subr.bf16.mxu0 0
  %461 = vmatpush1.bf16.msra.mxu0 0
  %462 = vmatprep.subr.bf16.mxu0 0
  %463 = vmatpush1.bf16.msra.mxu0 0
  %464 = vmatprep.subr.bf16.mxu0 0
  %465 = vmatpush1.bf16.msra.mxu0 0
  %466 = vmatprep.subr.bf16.mxu0 0
  %467 = vmatpush1.bf16.msra.mxu0 0
  %468 = vmatprep.subr.bf16.mxu0 0
  %469 = vmatpush1.bf16.msra.mxu0 0
  %470 = vmatprep.subr.bf16.mxu0 0
  %471 = vmatpush1.bf16.msra.mxu0 0
  %472 = vmatprep.mubr.bf16.mxu0 0
  %473 = vmatmul.mubr.bf16.gmra.mrb[0].mxu0 %v438
  %v474 = vpop.f32.mrb[0].mxu0
  %v475 = vadd.f32 0.0, %v474
  %v476 = vpop.f32.mrb[0].mxu0
  %v477 = vpop.f32.mrb[0].mxu0
  %v478 = vpop.f32.mrb[0].mxu0
  %479 = vdwg.mxu0
  %v480 = vadd.f32 %v436, %v475
  %v481 = vtanh.pop %v480
  %482 = vst.msk [vmem:[%s435] sm:$0xff] %vm85, %v481
  %v483 = vpack.c.bf16 %v481, %v481
  %s484 = scalar_lea.vmem [#allocation3], 40
  %v485 = vld [vmem:[%s484] sm:$0xff]
  %v487 = vsel %vm85, %v483, 0
  %489 = vmatprep.subr.bf16.mxu0 0
  %490 = vmatpush1.bf16.msra.mxu0 %v237
  %491 = vmatprep.subr.bf16.mxu0 0
  %492 = vmatpush1.bf16.msra.mxu0 %v238
  %493 = vmatprep.subr.bf16.mxu0 0
  %494 = vmatpush1.bf16.msra.mxu0 0
  %495 = vmatprep.subr.bf16.mxu0 0
  %496 = vmatpush1.bf16.msra.mxu0 0
  %497 = vmatprep.subr.bf16.mxu0 0
  %498 = vmatpush1.bf16.msra.mxu0 0
  %499 = vmatprep.subr.bf16.mxu0 0
  %500 = vmatpush1.bf16.msra.mxu0 0
  %501 = vmatprep.subr.bf16.mxu0 0
  %502 = vmatpush1.bf16.msra.mxu0 0
  %503 = vmatprep.subr.bf16.mxu0 0
  %504 = vmatpush1.bf16.msra.mxu0 0
  %505 = vmatprep.subr.bf16.mxu0 0
  %506 = vmatpush1.bf16.msra.mxu0 0
  %507 = vmatprep.subr.bf16.mxu0 0
  %508 = vmatpush1.bf16.msra.mxu0 0
  %509 = vmatprep.subr.bf16.mxu0 0
  %510 = vmatpush1.bf16.msra.mxu0 0
  %511 = vmatprep.subr.bf16.mxu0 0
  %512 = vmatpush1.bf16.msra.mxu0 0
  %513 = vmatprep.subr.bf16.mxu0 0
  %514 = vmatpush1.bf16.msra.mxu0 0
  %515 = vmatprep.subr.bf16.mxu0 0
  %516 = vmatpush1.bf16.msra.mxu0 0
  %517 = vmatprep.subr.bf16.mxu0 0
  %518 = vmatpush1.bf16.msra.mxu0 0
  %519 = vmatprep.subr.bf16.mxu0 0
  %520 = vmatpush1.bf16.msra.mxu0 0
  %521 = vmatprep.mubr.bf16.mxu0 0
  %522 = vmatmul.mubr.bf16.gmra.mrb[0].mxu0 %v487
  %v523 = vpop.f32.mrb[0].mxu0
  %v524 = vadd.f32 0.0, %v523
  %v525 = vpop.f32.mrb[0].mxu0
  %v526 = vpop.f32.mrb[0].mxu0
  %v527 = vpop.f32.mrb[0].mxu0
  %528 = vdwg.mxu0
  %v529 = vadd.f32 %v485, %v524
  %v530 = vtanh.pop %v529
  %531 = vst.msk [vmem:[%s484] sm:$0xff] %vm85, %v530
  %v532 = vpack.c.bf16 %v530, %v530
  %s533 = scalar_lea.vmem [#allocation3], 48
  %v534 = vld [vmem:[%s533] sm:$0xff]
  %v536 = vsel %vm85, %v532, 0
  %538 = vmatprep.subr.bf16.mxu0 0
  %539 = vmatpush1.bf16.msra.mxu0 %v237
  %540 = vmatprep.subr.bf16.mxu0 0
  %541 = vmatpush1.bf16.msra.mxu0 %v238
  %542 = vmatprep.subr.bf16.mxu0 0
  %543 = vmatpush1.bf16.msra.mxu0 0
  %544 = vmatprep.subr.bf16.mxu0 0
  %545 = vmatpush1.bf16.msra.mxu0 0
  %546 = vmatprep.subr.bf16.mxu0 0
  %547 = vmatpush1.bf16.msra.mxu0 0
  %548 = vmatprep.subr.bf16.mxu0 0
  %549 = vmatpush1.bf16.msra.mxu0 0
  %550 = vmatprep.subr.bf16.mxu0 0
  %551 = vmatpush1.bf16.msra.mxu0 0
  %552 = vmatprep.subr.bf16.mxu0 0
  %553 = vmatpush1.bf16.msra.mxu0 0
  %554 = vmatprep.subr.bf16.mxu0 0
  %555 = vmatpush1.bf16.msra.mxu0 0
  %556 = vmatprep.subr.bf16.mxu0 0
  %557 = vmatpush1.bf16.msra.mxu0 0
  %558 = vmatprep.subr.bf16.mxu0 0
  %559 = vmatpush1.bf16.msra.mxu0 0
  %560 = vmatprep.subr.bf16.mxu0 0
  %561 = vmatpush1.bf16.msra.mxu0 0
  %562 = vmatprep.subr.bf16.mxu0 0
  %563 = vmatpush1.bf16.msra.mxu0 0
  %564 = vmatprep.subr.bf16.mxu0 0
  %565 = vmatpush1.bf16.msra.mxu0 0
  %566 = vmatprep.subr.bf16.mxu0 0
  %567 = vmatpush1.bf16.msra.mxu0 0
  %568 = vmatprep.subr.bf16.mxu0 0
  %569 = vmatpush1.bf16.msra.mxu0 0
  %570 = vmatprep.mubr.bf16.mxu0 0
  %571 = vmatmul.mubr.bf16.gmra.mrb[0].mxu0 %v536
  %v572 = vpop.f32.mrb[0].mxu0
  %v573 = vadd.f32 0.0, %v572
  %v574 = vpop.f32.mrb[0].mxu0
  %v575 = vpop.f32.mrb[0].mxu0
  %v576 = vpop.f32.mrb[0].mxu0
  %577 = vdwg.mxu0
  %v578 = vadd.f32 %v534, %v573
  %v579 = vtanh.pop %v578
  %580 = vst.msk [vmem:[%s533] sm:$0xff] %vm85, %v579
  %v581 = vpack.c.bf16 %v579, %v579
  %s582 = scalar_lea.vmem [#allocation3], 56
  %v583 = vld [vmem:[%s582] sm:$0xff]
  %v585 = vsel %vm85, %v581, 0
  %587 = vmatprep.subr.bf16.mxu0 0
  %588 = vmatpush1.bf16.msra.mxu0 %v237
  %589 = vmatprep.subr.bf16.mxu0 0
  %590 = vmatpush1.bf16.msra.mxu0 %v238
  %591 = vmatprep.subr.bf16.mxu0 0
  %592 = vmatpush1.bf16.msra.mxu0 0
  %593 = vmatprep.subr.bf16.mxu0 0
  %594 = vmatpush1.bf16.msra.mxu0 0
  %595 = vmatprep.subr.bf16.mxu0 0
  %596 = vmatpush1.bf16.msra.mxu0 0
  %597 = vmatprep.subr.bf16.mxu0 0
  %598 = vmatpush1.bf16.msra.mxu0 0
  %599 = vmatprep.subr.bf16.mxu0 0
  %600 = vmatpush1.bf16.msra.mxu0 0
  %601 = vmatprep.subr.bf16.mxu0 0
  %602 = vmatpush1.bf16.msra.mxu0 0
  %603 = vmatprep.subr.bf16.mxu0 0
  %604 = vmatpush1.bf16.msra.mxu0 0
  %605 = vmatprep.subr.bf16.mxu0 0
  %606 = vmatpush1.bf16.msra.mxu0 0
  %607 = vmatprep.subr.bf16.mxu0 0
  %608 = vmatpush1.bf16.msra.mxu0 0
  %609 = vmatprep.subr.bf16.mxu0 0
  %610 = vmatpush1.bf16.msra.mxu0 0
  %611 = vmatprep.subr.bf16.mxu0 0
  %612 = vmatpush1.bf16.msra.mxu0 0
  %613 = vmatprep.subr.bf16.mxu0 0
  %614 = vmatpush1.bf16.msra.mxu0 0
  %615 = vmatprep.subr.bf16.mxu0 0
  %616 = vmatpush1.bf16.msra.mxu0 0
  %617 = vmatprep.subr.bf16.mxu0 0
  %618 = vmatpush1.bf16.msra.mxu0 0
  %619 = vmatprep.mubr.bf16.mxu0 0
  %620 = vmatmul.mubr.bf16.gmra.mrb[0].mxu0 %v585
  %v621 = vpop.f32.mrb[0].mxu0
  %v622 = vadd.f32 0.0, %v621
  %v623 = vpop.f32.mrb[0].mxu0
  %v624 = vpop.f32.mrb[0].mxu0
  %v625 = vpop.f32.mrb[0].mxu0
  %626 = vdwg.mxu0
  %v627 = vadd.f32 %v583, %v622
  %v628 = vtanh.pop %v627
  %629 = vst.msk [vmem:[%s582] sm:$0xff] %vm85, %v628
  %v630 = vpack.c.bf16 %v628, %v628
  %vm631 = vcmask 257024
  %632 = vst.msk [vmem:[#allocation2] sm:$0xf] %vm631, %v630
  %v633 = vld [vmem:[#allocation3] sm:$0xff]
  %v634 = vld [vmem:[#allocation3 + $0x8] sm:$0xff]
  %v635 = vld [vmem:[#allocation3 + $0x10] sm:$0xff]
  %v636 = vld [vmem:[#allocation3 + $0x18] sm:$0xff]
  %v637 = vld [vmem:[#allocation3 + $0x20] sm:$0xff]
  %v638 = vld [vmem:[#allocation3 + $0x28] sm:$0xff]
  %v639 = vld [vmem:[#allocation3 + $0x30] sm:$0xff]
  %v640 = vld [vmem:[#allocation3 + $0x38] sm:$0xff]
  %v641 = vld [vmem:[%s4] sm:$0xff]
  %v642 = vld [vmem:[%s4 + $0x8] sm:$0xff]
  %v643 = vld [vmem:[%s4 + $0x10] sm:$0xff]
  %v644 = vld [vmem:[%s4 + $0x18] sm:$0xff]
  %v645 = vld [vmem:[%s5] sm:$0x1]
  %v647 = vlaneseq
  %v648 = vshrl.u32 %v647, 7
  %v649 = vsub.s32 0, %v648
  %v650 = vrot.slane %v645, %v649
  %v653 = vsel %vm85, %v633, 0
  %v656 = vsel %vm85, %v634, 0
  %v659 = vsel %vm85, %v635, 0
  %v662 = vsel %vm85, %v636, 0
  %v665 = vsel %vm85, %v637, 0
  %v668 = vsel %vm85, %v638, 0
  %v671 = vsel %vm85, %v639, 0
  %v674 = vsel %vm85, %v640, 0
  %676 = vmatprep.subr.mxu0 0.0
  %677 = vmatpush1.msra.mxu0 %v641
  %678 = vmatprep.subr.mxu0 0.0
  %679 = vmatpush1.msra.mxu0 %v642
  %680 = vmatprep.subr.mxu0 0.0
  %681 = vmatpush1.msra.mxu0 %v643
  %682 = vmatprep.subr.mxu0 0.0
  %683 = vmatpush1.msra.mxu0 %v644
  %684 = vmatprep.subr.mxu0 0.0
  %685 = vmatpush1.msra.mxu0 0.0
  %686 = vmatprep.subr.mxu0 0.0
  %687 = vmatpush1.msra.mxu0 0.0
  %688 = vmatprep.subr.mxu0 0.0
  %689 = vmatpush1.msra.mxu0 0.0
  %690 = vmatprep.subr.mxu0 0.0
  %691 = vmatpush1.msra.mxu0 0.0
  %692 = vmatprep.subr.mxu0 0.0
  %693 = vmatpush1.msra.mxu0 0.0
  %694 = vmatprep.subr.mxu0 0.0
  %695 = vmatpush1.msra.mxu0 0.0
  %696 = vmatprep.subr.mxu0 0.0
  %697 = vmatpush1.msra.mxu0 0.0
  %698 = vmatprep.subr.mxu0 0.0
  %699 = vmatpush1.msra.mxu0 0.0
  %700 = vmatprep.subr.mxu0 0.0
  %701 = vmatpush1.msra.mxu0 0.0
  %702 = vmatprep.subr.mxu0 0.0
  %703 = vmatpush1.msra.mxu0 0.0
  %704 = vmatprep.subr.mxu0 0.0
  %705 = vmatpush1.msra.mxu0 0.0
  %706 = vmatprep.subr.mxu0 0.0
  %707 = vmatpush1.msra.mxu0 0.0
  %708 = vmatprep.subr.mxu0 0.0
  %709 = vmatpush1.msra.mxu0 0.0
  %710 = vmatprep.subr.mxu0 0.0
  %711 = vmatpush1.msra.mxu0 0.0
  %712 = vmatprep.subr.mxu0 0.0
  %713 = vmatpush1.msra.mxu0 0.0
  %714 = vmatprep.subr.mxu0 0.0
  %715 = vmatpush1.msra.mxu0 0.0
  %716 = vmatprep.subr.mxu0 0.0
  %717 = vmatpush1.msra.mxu0 0.0
  %718 = vmatprep.subr.mxu0 0.0
  %719 = vmatpush1.msra.mxu0 0.0
  %720 = vmatprep.subr.mxu0 0.0
  %721 = vmatpush1.msra.mxu0 0.0
  %722 = vmatprep.subr.mxu0 0.0
  %723 = vmatpush1.msra.mxu0 0.0
  %724 = vmatprep.subr.mxu0 0.0
  %725 = vmatpush1.msra.mxu0 0.0
  %726 = vmatprep.subr.mxu0 0.0
  %727 = vmatpush1.msra.mxu0 0.0
  %728 = vmatprep.subr.mxu0 0.0
  %729 = vmatpush1.msra.mxu0 0.0
  %730 = vmatprep.subr.mxu0 0.0
  %731 = vmatpush1.msra.mxu0 0.0
  %732 = vmatprep.subr.mxu0 0.0
  %733 = vmatpush1.msra.mxu0 0.0
  %734 = vmatprep.subr.mxu0 0.0
  %735 = vmatpush1.msra.mxu0 0.0
  %736 = vmatprep.subr.mxu0 0.0
  %737 = vmatpush1.msra.mxu0 0.0
  %738 = vmatprep.subr.mxu0 0.0
  %739 = vmatpush1.msra.mxu0 0.0
  %740 = vmatprep.mubr.f32.mxu0 0.0
  %741 = vmatmul.mubr.f32.gmra.mrb[0].mxu0 %v653
  %v742 = vpop.f32.mrb[0].mxu0
  %v743 = vadd.f32 %v650, %v742
  %v744 = vpop.f32.mrb[0].mxu0
  %745 = vmatprep.mubr.f32.mxu0 0.0
  %746 = vmatmul.mubr.f32.gmra.mrb[0].mxu0 %v656
  %v747 = vpop.f32.mrb[0].mxu0
  %v748 = vadd.f32 %v650, %v747
  %v749 = vpop.f32.mrb[0].mxu0
  %750 = vmatprep.mubr.f32.mxu0 0.0
  %751 = vmatmul.mubr.f32.gmra.mrb[0].mxu0 %v659
  %v752 = vpop.f32.mrb[0].mxu0
  %v753 = vadd.f32 %v650, %v752
  %v754 = vpop.f32.mrb[0].mxu0
  %755 = vmatprep.mubr.f32.mxu0 0.0
  %756 = vmatmul.mubr.f32.gmra.mrb[0].mxu0 %v662
  %v757 = vpop.f32.mrb[0].mxu0
  %v758 = vadd.f32 %v650, %v757
  %v759 = vpop.f32.mrb[0].mxu0
  %760 = vmatprep.mubr.f32.mxu0 0.0
  %761 = vmatmul.mubr.f32.gmra.mrb[0].mxu0 %v665
  %v762 = vpop.f32.mrb[0].mxu0
  %v763 = vadd.f32 %v650, %v762
  %v764 = vpop.f32.mrb[0].mxu0
  %765 = vmatprep.mubr.f32.mxu0 0.0
  %766 = vmatmul.mubr.f32.gmra.mrb[0].mxu0 %v668
  %v767 = vpop.f32.mrb[0].mxu0
  %v768 = vadd.f32 %v650, %v767
  %v769 = vpop.f32.mrb[0].mxu0
  %770 = vmatprep.mubr.f32.mxu0 0.0
  %771 = vmatmul.mubr.f32.gmra.mrb[0].mxu0 %v671
  %v772 = vpop.f32.mrb[0].mxu0
  %v773 = vadd.f32 %v650, %v772
  %v774 = vpop.f32.mrb[0].mxu0
  %775 = vmatprep.mubr.f32.mxu0 0.0
  %776 = vmatmul.mubr.f32.gmra.mrb[0].mxu0 %v674
  %v777 = vpop.f32.mrb[0].mxu0
  %v778 = vadd.f32 %v650, %v777
  %v779 = vpop.f32.mrb[0].mxu0
  %780 = vdwg.mxu0
  %vm781 = vcmask 130048
  %782 = vst.msk [vmem:[%s56] sm:$0xff] %vm781, %v743
  %783 = vst.msk [vmem:[%s56 + $0x8] sm:$0xff] %vm781, %v748
  %784 = vst.msk [vmem:[%s56 + $0x10] sm:$0xff] %vm781, %v753
  %785 = vst.msk [vmem:[%s56 + $0x18] sm:$0xff] %vm781, %v758
  %786 = vst.msk [vmem:[%s56 + $0x20] sm:$0xff] %vm781, %v763
  %787 = vst.msk [vmem:[%s56 + $0x28] sm:$0xff] %vm781, %v768
  %788 = vst.msk [vmem:[%s56 + $0x30] sm:$0xff] %vm781, %v773
  %789 = vst.msk [vmem:[%s56 + $0x38] sm:$0xff] %vm781, %v778
  %s790 = sadd.s32 0, 0
  %s791 = smul.u32 8, %s790
  %p792 = scmp.lt.s32.totalorder %s791, 7
  %s793 = scalar_select %p792, %s791, 7
  %s794 = smul.addr %s793, 8
  %s795 = scalar_lea.vmem %s6, %s794
  // Predicated region
  $region30: #{tpu_custom_call.1} parent=0 // pred_check
    _
  $region31: #{tpu_custom_call.1} parent=0 // pred_check_branch
    %797 = sbr.rel (0) target = $region33
  $region32: #{tpu_custom_call.1} parent=0 // pred_region
    %s798 = sadd.s32 0, 0
    %s799 = smul.u32 8, %s798
  $region33: #{tpu_custom_call.1} parent=0 // pred_fallthru
    _
  // Predicated region
  $region34: #{tpu_custom_call.1} parent=0 // pred_check
    _
  $region35: #{tpu_custom_call.1} parent=0 // pred_check_branch
    %801 = sbr.rel (0) target = $region37
  $region36: #{tpu_custom_call.1} parent=0 // pred_region
    %s802 = sadd.s32 0, 0
    %s803 = smul.u32 8, %s802
    %p804 = scmp.lt.s32.totalorder %s803, 7
    %s805 = scalar_select %p804, %s803, 7
    %s806 = smul.addr %s805, 8
    %s807 = scalar_lea.vmem %s6, %s806
  $region37: #{tpu_custom_call.1} parent=0 // pred_fallthru
    _

</llo_original>
